<compile_context>
chip_gen: v6e
topology: v6e:2x2x1
jax: 0.10.0
libtpu: 0.0.40
codegen_flags: <defaults>
</compile_context>

<pallas_src>
import functools

import jax
import jax.numpy as jnp
from jax.experimental import pallas as pl
from jax.experimental.pallas import tpu as pltpu

_NEG_PAD = -1e30  # bias value for padded (fake) classes; finite so 0*pad == 0

_VMEM_LIMIT = 32 * 1024 * 1024


def _round_up(x, m):
    return (x + m - 1) // m * m


def _divisor_tile(extent, pref, unit):
    """Largest multiple of `unit` that is <= pref and divides `extent`
    (extent is already a multiple of `unit`)."""
    t = min(pref, extent)
    t -= t % unit
    while t > unit and extent % t:
        t -= unit
    return max(t, unit)


# --------------------------- forward (logits) kernel ------------------------ #
def _linear_bias_kernel(x_ref, w_ref, b_ref, o_ref, acc_ref):
    # grid = (M_tiles, N_tiles, K_tiles); K is the reduction axis (last).
    @pl.when(pl.program_id(2) == 0)
    def _init():
        acc_ref[...] = jnp.zeros_like(acc_ref)

    acc_ref[...] += jnp.dot(x_ref[...], w_ref[...],
                            preferred_element_type=jnp.float32)

    @pl.when(pl.program_id(2) == pl.num_programs(2) - 1)
    def _finish():
        # bias add + cast stay in f32 / epilogue (v5e has no bf16 VPU anyway).
        o_ref[...] = (acc_ref[...] + b_ref[...]).astype(o_ref.dtype)


def linear_forward(x, w, b, *, tm, tn, tk, out_dtype=jnp.float32):
    """logits = x @ w + b. x/w/b are pre-padded so tm|B, tn|C, tk|D exactly."""
    Bp, Dp = x.shape
    Dw, Cp = w.shape
    assert Dw == Dp and Bp % tm == 0 and Cp % tn == 0 and Dp % tk == 0
    grid = (Bp // tm, Cp // tn, Dp // tk)
    flops = 2 * Bp * Dp * Cp
    bytes_accessed = int(x.size * x.dtype.itemsize
                         + w.size * w.dtype.itemsize
                         + b.size * b.dtype.itemsize
                         + Bp * Cp * jnp.dtype(out_dtype).itemsize)
    return pl.pallas_call(
        _linear_bias_kernel,
        out_shape=jax.ShapeDtypeStruct((Bp, Cp), out_dtype),
        grid_spec=pltpu.PrefetchScalarGridSpec(
            num_scalar_prefetch=0,
            grid=grid,
            in_specs=[
                pl.BlockSpec((tm, tk), lambda i, j, k: (i, k)),
                pl.BlockSpec((tk, tn), lambda i, j, k: (k, j)),
                pl.BlockSpec((1, tn), lambda i, j, k: (0, j)),
            ],
            out_specs=pl.BlockSpec((tm, tn), lambda i, j, k: (i, j)),
            scratch_shapes=[pltpu.VMEM((tm, tn), jnp.float32)],
        ),
        compiler_params=pltpu.CompilerParams(
            dimension_semantics=("parallel", "parallel", "arbitrary"),
            vmem_limit_bytes=_VMEM_LIMIT),
        cost_estimate=pl.CostEstimate(flops=flops, transcendentals=0,
                                      bytes_accessed=bytes_accessed),
    )(x, w, b)


# ----------------- fused linear + cross-entropy (per-row loss) -------------- #
def _fused_ce_kernel(x_ref, w_ref, b_ref, lab_ref, rowloss_ref,
                     acc_ref, m_ref, l_ref, t_ref, *, tn):
    # grid = (M_tiles, N_tiles (classes), K_tiles); online LSE over N tiles.
    j = pl.program_id(1)
    k = pl.program_id(2)
    last_j = pl.num_programs(1) - 1
    last_k = pl.num_programs(2) - 1

    @pl.when(jnp.logical_and(j == 0, k == 0))
    def _init_state():
        m_ref[...] = jnp.full(m_ref.shape, _NEG_PAD, jnp.float32)
        l_ref[...] = jnp.zeros_like(l_ref)
        t_ref[...] = jnp.zeros_like(t_ref)

    @pl.when(k == 0)
    def _init_acc():
        acc_ref[...] = jnp.zeros_like(acc_ref)

    acc_ref[...] += jnp.dot(x_ref[...], w_ref[...],
                            preferred_element_type=jnp.float32)

    @pl.when(k == last_k)
    def _online_lse():
        # Logits for this (batch, class) tile. Padded class columns carry a
        # -1e30 bias, so they vanish from max / sum-exp with no explicit mask.
        logits = acc_ref[...] + b_ref[...]                        # (tm, tn) f32
        m_prev = m_ref[...]
        m_new = jnp.maximum(m_prev, jnp.max(logits, axis=1, keepdims=True))
        alpha = jnp.exp(m_prev - m_new)
        l_ref[...] = alpha * l_ref[...] + jnp.sum(
            jnp.exp(logits - m_new), axis=1, keepdims=True)
        m_ref[...] = m_new
        # Target-logit gather: iota-compare against int32 labels (no one-hot
        # stream). Labels < num_classes, so padded columns never match.
        col = jax.lax.broadcasted_iota(jnp.int32, logits.shape, 1) + j * tn
        hit = col == lab_ref[...]                                  # (tm, tn)
        t_ref[...] += jnp.sum(jnp.where(hit, logits, 0.0),
                              axis=1, keepdims=True)

    @pl.when(jnp.logical_and(j == last_j, k == last_k))
    def _finish():
        # per-row CE loss: logsumexp(logits) - logit[target]
        rowloss_ref[...] = (m_ref[...] + jnp.log(l_ref[...]) - t_ref[...]
                            ).astype(rowloss_ref.dtype)


def fused_linear_ce_rowloss(x, w, b, labels_idx, *, tm, tn, tk):
    """Per-row CrossEntropy(x @ w + b, labels_idx) in one pallas_call.
    Returns (B_pad, 1) f32; caller slices to the real batch and takes the mean."""
    Bp, Dp = x.shape
    _, Cp = w.shape
    assert Bp % tm == 0 and Cp % tn == 0 and Dp % tk == 0
    grid = (Bp // tm, Cp // tn, Dp // tk)
    kernel = functools.partial(_fused_ce_kernel, tn=tn)
    flops = 2 * Bp * Dp * Cp
    bytes_accessed = int(x.size * x.dtype.itemsize
                         + w.size * w.dtype.itemsize
                         + b.size * b.dtype.itemsize
                         + labels_idx.size * 4 + Bp * 4)
    return pl.pallas_call(
        kernel,
        out_shape=jax.ShapeDtypeStruct((Bp, 1), jnp.float32),
        grid_spec=pltpu.PrefetchScalarGridSpec(
            num_scalar_prefetch=0,
            grid=grid,
            in_specs=[
                pl.BlockSpec((tm, tk), lambda i, j, k: (i, k)),
                pl.BlockSpec((tk, tn), lambda i, j, k: (k, j)),
                pl.BlockSpec((1, tn), lambda i, j, k: (0, j)),
                pl.BlockSpec((tm, 1), lambda i, j, k: (i, 0)),
            ],
            out_specs=pl.BlockSpec((tm, 1), lambda i, j, k: (i, 0)),
            scratch_shapes=[
                pltpu.VMEM((tm, tn), jnp.float32),   # logits tile accumulator
                pltpu.VMEM((tm, 1), jnp.float32),    # running max
                pltpu.VMEM((tm, 1), jnp.float32),    # running sum-exp
                pltpu.VMEM((tm, 1), jnp.float32),    # running target logit
            ],
        ),
        # Per-M-tile outputs + per-core scratch -> batch axis can be parallel
        # (shards across v7x's 2 TCs); class and K axes carry state -> arbitrary.
        compiler_params=pltpu.CompilerParams(
            dimension_semantics=("parallel", "arbitrary", "arbitrary"),
            vmem_limit_bytes=_VMEM_LIMIT),
        cost_estimate=pl.CostEstimate(flops=flops, transcendentals=Bp * Cp,
                                      bytes_accessed=bytes_accessed),
    )(x, w, b, labels_idx)


# ------------------------------ model wrapper ------------------------------- #
class BaseModelPallas:
    """Concrete BaseModel: dict_module = {'fc': Linear(D, C)}."""

    def __init__(self, in_features, num_classes, key,
                 compute_dtype=jnp.bfloat16, tm=256, tn=512, tk=512):
        self.in_features = in_features
        self.num_classes = num_classes
        self.compute_dtype = compute_dtype

        # ---- tile / padding geometry (decided once) ----
        self.c_pad = _round_up(num_classes, 128)          # lane-dense classes
        self.tn = _divisor_tile(self.c_pad, tn, 128)      # tn | c_pad
        self.tk = min(tk, _round_up(in_features, 128))    # multiple of 128
        self.d_pad = _round_up(in_features, self.tk)      # tk | d_pad
        self.tm_pref = tm                                  # multiple of 8

        kw, kb = jax.random.split(key)
        bound = float(in_features) ** -0.5
        w = jax.random.uniform(kw, (in_features, num_classes), jnp.float32,
                               -bound, bound)
        b = jax.random.uniform(kb, (1, num_classes), jnp.float32,
                               -bound, bound)
        # Pad once: zero K-rows (contribute 0 to the dot), zero weight columns
        # and -1e30 bias on fake classes (drop out of max / LSE, never gathered).
        w = jnp.pad(w, ((0, self.d_pad - in_features),
                        (0, self.c_pad - num_classes)))
        b = jnp.pad(b, ((0, 0), (0, self.c_pad - num_classes)),
                    constant_values=_NEG_PAD)
        # Pre-cast weights ONCE (no per-call astype HBM pass); bias stays f32
        # because the epilogue math is f32 on every generation.
        self.w = w.astype(compute_dtype)
        self.b = b

    # -- helpers --
    def _batch_geom(self, batch):
        tm = min(self.tm_pref, _round_up(batch, 8))
        return tm, _round_up(batch, tm)

    def _pad_inputs(self, x, b_pad):
        xp = x.astype(self.compute_dtype)
        B, D = x.shape
        if b_pad != B or self.d_pad != D:
            xp = jnp.pad(xp, ((0, b_pad - B), (0, self.d_pad - D)))
        return xp

    # -- forward --
    def forward_padded(self, x):
        """Lane-dense padded logits (B_pad, c_pad); no narrow slice."""
        B = x.shape[0]
        tm, b_pad = self._batch_geom(B)
        xp = self._pad_inputs(x, b_pad)
        return linear_forward(xp, self.w, self.b, tm=tm, tn=self.tn,
                              tk=self.tk, out_dtype=self.compute_dtype)

    def __call__(self, x):
        # Keeps nn.Module semantics: returns (B, num_classes) logits. The
        # narrow slice is an extra (cheap) XLA copy; perf-sensitive consumers
        # should use forward_padded() and ignore the padded columns.
        B = x.shape[0]
        return self.forward_padded(x)[:B, :self.num_classes]

    # -- loss --
    def loss(self, x, labels):
        """mean CrossEntropy(forward(x), argmax(labels, 1))."""
        B = x.shape[0]
        tm, b_pad = self._batch_geom(B)
        if labels.ndim == 2:                      # one-hot IntTensor labels
            idx = jnp.argmax(labels, axis=1).astype(jnp.int32)
        else:                                     # already class indices
            idx = labels.astype(jnp.int32)
        idx = idx.reshape(-1, 1)
        if b_pad != B:
            idx = jnp.pad(idx, ((0, b_pad - B), (0, 0)))
        xp = self._pad_inputs(x, b_pad)
        row_loss = fused_linear_ce_rowloss(xp, self.w, self.b, idx,
                                           tm=tm, tn=self.tn, tk=self.tk)
        # Padded batch rows are simply excluded here; the sum over B scalars is
        # a negligible XLA reduction.
        return jnp.sum(row_loss[:B, 0]) * (1.0 / B)


# ---------------------------------- main ------------------------------------ #
if __name__ == "__main__":
    key = jax.random.PRNGKey(0)
    k_x, k_y, k_p = jax.random.split(key, 3)

    B, D, C = 8, 32, 10
    x = jax.random.normal(k_x, (B, D), jnp.float32)
    y_idx = jax.random.randint(k_y, (B,), 0, C)
    labels = jax.nn.one_hot(y_idx, C, dtype=jnp.int32)  # IntTensor one-hot labels

    # pure-JAX reference (unpadded params)
    model_f32 = BaseModelPallas(D, C, k_p, compute_dtype=jnp.float32)
    w_true = model_f32.w[:D, :C].astype(jnp.float32)
    b_true = model_f32.b[:, :C]
    ref_logits = x @ w_true + b_true
    ref_loss = jnp.mean(
        jax.nn.logsumexp(ref_logits, axis=1)
        - jnp.take_along_axis(ref_logits, y_idx[:, None], axis=1)[:, 0])

    # f32 path: tight numerics check
    logits = model_f32(x)
    loss = model_f32.loss(x, labels)
    jax.block_until_ready((logits, loss))
    assert jnp.allclose(logits, ref_logits, atol=1e-4, rtol=1e-4)
    assert jnp.allclose(loss, ref_loss, atol=1e-4, rtol=1e-4)

    # bf16 (default, MXU-native) path: looser check
    model_bf16 = BaseModelPallas(D, C, k_p)  # compute_dtype=bfloat16 default
    logits_bf = model_bf16(x).astype(jnp.float32)
    loss_bf = model_bf16.loss(x, labels)
    jax.block_until_ready((logits_bf, loss_bf))
    assert jnp.allclose(logits_bf, ref_logits, atol=5e-2, rtol=5e-2)
    assert jnp.allclose(loss_bf, ref_loss, atol=5e-2, rtol=5e-2)

    print("KERNEL_OK")
</pallas_src>

<mosaic_0001>
module attributes {stable_mosaic.version = 11 : i64} {
  func.func @_linear_bias_kernel(%arg0: i32, %arg1: i32, %arg2: i32, %arg3: memref<8x128xf32, #tpu.memory_space<vmem>>, %arg4: memref<128x128xf32, #tpu.memory_space<vmem>>, %arg5: memref<1x128xf32, #tpu.memory_space<vmem>>, %arg6: memref<8x128xf32, #tpu.memory_space<vmem>>, %arg7: memref<8x128xf32, #tpu.memory_space<vmem>>) attributes {dimension_semantics = [#tpu.dimension_semantics<parallel>, #tpu.dimension_semantics<parallel>, #tpu.dimension_semantics<arbitrary>], iteration_bounds = array<i64: 1, 1, 1>, scalar_prefetch = 0 : i64, scratch_operands = 1 : i64, tpu.core_type = #tpu.core_type<tc>, window_params = [{transform_indices = @transform_0, window_bounds = array<i64: 8, 128>}, {transform_indices = @transform_1, window_bounds = array<i64: 128, 128>}, {transform_indices = @transform_2, window_bounds = array<i64: 1, 128>}, {transform_indices = @transform_3, window_bounds = array<i64: 8, 128>}]} {
    %c0_i32 = arith.constant 0 : i32
    %0 = arith.cmpi eq, %arg2, %c0_i32 : i32
    %1 = arith.extui %0 : i1 to i32
    %c0_i32_0 = arith.constant 0 : i32
    %2 = arith.cmpi ne, %1, %c0_i32_0 : i32
    scf.if %2 {
      %cst_10 = arith.constant 0.000000e+00 : f32
      %12 = vector.broadcast %cst_10 : f32 to vector<8x128xf32>
      %c0_11 = arith.constant 0 : index
      %c0_12 = arith.constant 0 : index
      %13 = vector.load %arg7[%c0_11, %c0_12] : memref<8x128xf32, #tpu.memory_space<vmem>>, vector<8x128xf32>
      tpu.vector_store %arg7[%c0_11, %c0_12], %12 {strides = array<i32>} : memref<8x128xf32, #tpu.memory_space<vmem>>, vector<8x128xf32>,
    } else {
    }
    %c0 = arith.constant 0 : index
    %c0_1 = arith.constant 0 : index
    %3 = vector.load %arg7[%c0, %c0_1] : memref<8x128xf32, #tpu.memory_space<vmem>>, vector<8x128xf32>
    %c0_2 = arith.constant 0 : index
    %c0_3 = arith.constant 0 : index
    %4 = vector.load %arg3[%c0_2, %c0_3] : memref<8x128xf32, #tpu.memory_space<vmem>>, vector<8x128xf32>
    %c0_4 = arith.constant 0 : index
    %c0_5 = arith.constant 0 : index
    %5 = vector.load %arg4[%c0_4, %c0_5] : memref<128x128xf32, #tpu.memory_space<vmem>>, vector<128x128xf32>
    %cst = arith.constant dense<0.000000e+00> : vector<8x128xf32>
    %6 = tpu.matmul %4, %5, %cst {dimension_numbers = #tpu.dot_dimension_numbers<[1], [0], [0], [1], [0, 0, 1, 1], [], []>} : vector<8x128xf32>, vector<128x128xf32>, vector<8x128xf32> -> vector<8x128xf32>
    %7 = arith.addf %3, %6 : vector<8x128xf32>
    %c0_6 = arith.constant 0 : index
    %c0_7 = arith.constant 0 : index
    %8 = vector.load %arg7[%c0_6, %c0_7] : memref<8x128xf32, #tpu.memory_space<vmem>>, vector<8x128xf32>
    tpu.vector_store %arg7[%c0_6, %c0_7], %7 {strides = array<i32>} : memref<8x128xf32, #tpu.memory_space<vmem>>, vector<8x128xf32>,
    %c0_i32_8 = arith.constant 0 : i32
    %9 = arith.cmpi eq, %arg2, %c0_i32_8 : i32
    %10 = arith.extui %9 : i1 to i32
    %c0_i32_9 = arith.constant 0 : i32
    %11 = arith.cmpi ne, %10, %c0_i32_9 : i32
    scf.if %11 {
      %c0_10 = arith.constant 0 : index
      %c0_11 = arith.constant 0 : index
      %12 = vector.load %arg7[%c0_10, %c0_11] : memref<8x128xf32, #tpu.memory_space<vmem>>, vector<8x128xf32>
      %c0_12 = arith.constant 0 : index
      %c0_13 = arith.constant 0 : index
      %13 = vector.load %arg5[%c0_12, %c0_13] : memref<1x128xf32, #tpu.memory_space<vmem>>, vector<1x128xf32>
      %14 = vector.broadcast %13 : vector<1x128xf32> to vector<8x128xf32>
      %15 = arith.addf %12, %14 : vector<8x128xf32>
      %c0_14 = arith.constant 0 : index
      %c0_15 = arith.constant 0 : index
      %16 = vector.load %arg6[%c0_14, %c0_15] : memref<8x128xf32, #tpu.memory_space<vmem>>, vector<8x128xf32>
      tpu.vector_store %arg6[%c0_14, %c0_15], %15 {strides = array<i32>} : memref<8x128xf32, #tpu.memory_space<vmem>>, vector<8x128xf32>,
    } else {
    }
    return
  }
  func.func @transform_0(%arg0: i32, %arg1: i32, %arg2: i32) -> (i32, i32) {
    %c0_i32 = arith.constant 0 : i32
    return %arg0, %arg2 : i32, i32
  }
  func.func @transform_1(%arg0: i32, %arg1: i32, %arg2: i32) -> (i32, i32) {
    %c0_i32 = arith.constant 0 : i32
    return %arg2, %arg1 : i32, i32
  }
  func.func @transform_2(%arg0: i32, %arg1: i32, %arg2: i32) -> (i32, i32) {
    %c0_i32 = arith.constant 0 : i32
    %c0_i32_0 = arith.constant 0 : i32
    return %c0_i32, %arg1 : i32, i32
  }
  func.func @transform_3(%arg0: i32, %arg1: i32, %arg2: i32) -> (i32, i32) {
    %c0_i32 = arith.constant 0 : i32
    return %arg0, %arg1 : i32, i32
  }
}

</mosaic_0001>

<llo_original>
// kernel: tpu_custom_call.1
$region0: #{tpu_custom_call.1}
  #allocation0 [shape = 'u32[]', space=smem, size = 0x4, offset = 0x4, fixed_abs, tag = 'smem constant byte address 0x4 - core index']
  #allocation1 [shape = 'u32[144,128]{1,0:T(1,128)}', space=vmem, size = 0x12000, scoped, tag = 'internal scratch']
  #allocation2 [shape = 'f32[8,128]{1,0:T(8,128)}', space=vmem, size = 0x1000, scoped, tag = 'scratch operand']
  %s0 = inlined_call_operand.hbm [shape: f32[8,128], index: 0, kind: input, shape index: {}]
  %s1 = inlined_call_operand.hbm [shape: f32[128,128], index: 1, kind: input, shape index: {}]
  %s2 = inlined_call_operand.vmem [shape: f32[1,128], index: 2, kind: input, shape index: {}]
  %s3 = inlined_call_operand.hbm [shape: f32[8,128], index: 3, kind: output, shape index: {}]
  %s4 = sld [smem:[#allocation0]]
  $region38: #{tpu_custom_call.1} parent=0
    _
  %s6 = ssub.s32 1, %s4
  %s7 = scalar_select 0, %s6, %s4
  $region1: #{tpu_custom_call.1} parent=0
    #allocation3 [shape = 'u8[4096]{0}', space=vmem, size = 0x1000, scoped, tag = 'input window, operand 0, single buffered']
    #allocation4 [shape = 's32[1]{0}', space=sflag, size = 0x4, scoped, tag = 'scoped memory for tpu_custom_call.1']
    #allocation5 [shape = 's32[1]{0}', space=sflag, size = 0x4, scoped, tag = 'scoped memory for tpu_custom_call.1']
    #allocation6 [shape = 'u8[65536]{0}', space=vmem, size = 0x10000, scoped, tag = 'input window, operand 1, single buffered']
    #allocation7 [shape = 's32[1]{0}', space=sflag, size = 0x4, scoped, tag = 'scoped memory for tpu_custom_call.1']
    #allocation8 [shape = 'u8[4096]{0}', space=vmem, size = 0x1000, scoped, tag = 'output window, operand 0, single buffered']
    %8 = vsyncpa [#allocation4], 0
    %9 = vsyncpa [#allocation7], 0
    %10 = vsyncpa [#allocation5], 0
    // Predicated region
    $region2: #{tpu_custom_call.1} parent=1 // pred_check
      _
    $region3: #{tpu_custom_call.1} parent=1 // pred_check_branch
      %12 = sbr.rel (0) target = $region5
    $region4: #{tpu_custom_call.1} parent=1 // pred_region
      %s14 = ssub.s32 128, 128
      %15 = vsyncadd [#allocation4], %s14
      %s17 = sshll.u32 [#allocation3], 4
      %s18 = int_to_ptr.vmem [resolvable:$true] %s17
      %20 = dma.hbm_to_vmem [thread:$0]  %s0, 128, %s18, [#allocation4]
    $region5: #{tpu_custom_call.1} parent=1 // pred_fallthru
      _
    // Predicated region
    $region6: #{tpu_custom_call.1} parent=1 // pred_check
      _
    $region7: #{tpu_custom_call.1} parent=1 // pred_check_branch
      %22 = sbr.rel (0) target = $region9
    $region8: #{tpu_custom_call.1} parent=1 // pred_region
      %s24 = ssub.s32 2048, 2048
      %25 = vsyncadd [#allocation7], %s24
      %s26 = sshll.u32 [#allocation6], 4
      %s27 = int_to_ptr.vmem [resolvable:$true] %s26
      %32 = dma.hbm_to_vmem [thread:$0]  %s1, 2048, %s27, [#allocation7], 128, 128, 8
    $region9: #{tpu_custom_call.1} parent=1 // pred_fallthru
      _
    // Predicated region
    $region10: #{tpu_custom_call.1} parent=1 // pred_check
      _
    $region11: #{tpu_custom_call.1} parent=1 // pred_check_branch
      %34 = sbr.rel (0) target = $region13
    $region12: #{tpu_custom_call.1} parent=1 // pred_region
      _
    $region13: #{tpu_custom_call.1} parent=1 // pred_fallthru
      _
    // Predicated region
    $region14: #{tpu_custom_call.1} parent=1 // pred_check
      _
    $region15: #{tpu_custom_call.1} parent=1 // pred_check_branch
      %36 = sbr.rel (0) target = $region17
    $region16: #{tpu_custom_call.1} parent=1 // pred_region
      %37 = dma.done [#allocation4], 128
    $region17: #{tpu_custom_call.1} parent=1 // pred_fallthru
      _
    // Predicated region
    $region18: #{tpu_custom_call.1} parent=1 // pred_check
      _
    $region19: #{tpu_custom_call.1} parent=1 // pred_check_branch
      %39 = sbr.rel (0) target = $region21
    $region20: #{tpu_custom_call.1} parent=1 // pred_region
      %40 = dma.done [#allocation7], 2048
    $region21: #{tpu_custom_call.1} parent=1 // pred_fallthru
      _
    %p41 = scmp.eq.s32.totalorder 0, 0
    // Predicated region
    $region22: #{tpu_custom_call.1} parent=1 // pred_check
      %p42 = pneg %p41
    $region23: #{tpu_custom_call.1} parent=1 // pred_check_branch
      %44 = sbr.rel (%p42) target = $region25
    $region24: #{tpu_custom_call.1} parent=1 // pred_region
      %45 = vst [vmem:[#allocation2] sm:$0xff] 0.0
    $region25: #{tpu_custom_call.1} parent=1 // pred_fallthru
      _
    %v46 = vld [vmem:[#allocation2] sm:$0xff]
    %v47 = vld [vmem:[#allocation3] sm:$0xff]
    %v48 = vld [vmem:[#allocation6] sm:$0xff]
    %v49 = vld [vmem:[#allocation6 + $0x8] sm:$0xff]
    %v50 = vld [vmem:[#allocation6 + $0x10] sm:$0xff]
    %v51 = vld [vmem:[#allocation6 + $0x18] sm:$0xff]
    %v52 = vld [vmem:[#allocation6 + $0x20] sm:$0xff]
    %v53 = vld [vmem:[#allocation6 + $0x28] sm:$0xff]
    %v54 = vld [vmem:[#allocation6 + $0x30] sm:$0xff]
    %v55 = vld [vmem:[#allocation6 + $0x38] sm:$0xff]
    %v56 = vld [vmem:[#allocation6 + $0x40] sm:$0xff]
    %v57 = vld [vmem:[#allocation6 + $0x48] sm:$0xff]
    %v58 = vld [vmem:[#allocation6 + $0x50] sm:$0xff]
    %v59 = vld [vmem:[#allocation6 + $0x58] sm:$0xff]
    %v60 = vld [vmem:[#allocation6 + $0x60] sm:$0xff]
    %v61 = vld [vmem:[#allocation6 + $0x68] sm:$0xff]
    %v62 = vld [vmem:[#allocation6 + $0x70] sm:$0xff]
    %v63 = vld [vmem:[#allocation6 + $0x78] sm:$0xff]
    %64 = vmatprep.subr.mxu0 0.0
    %65 = vmatpush1.msra.mxu0 %v63
    %66 = vmatprep.subr.mxu0 0.0
    %67 = vmatpush1.msra.mxu0 %v62
    %68 = vmatprep.subr.mxu0 0.0
    %69 = vmatpush1.msra.mxu0 %v61
    %70 = vmatprep.subr.mxu0 0.0
    %71 = vmatpush1.msra.mxu0 %v60
    %72 = vmatprep.subr.mxu0 0.0
    %73 = vmatpush1.msra.mxu0 %v59
    %74 = vmatprep.subr.mxu0 0.0
    %75 = vmatpush1.msra.mxu0 %v58
    %76 = vmatprep.subr.mxu0 0.0
    %77 = vmatpush1.msra.mxu0 %v57
    %78 = vmatprep.subr.mxu0 0.0
    %79 = vmatpush1.msra.mxu0 %v56
    %80 = vmatprep.subr.mxu0 0.0
    %81 = vmatpush1.msra.mxu0 %v55
    %82 = vmatprep.subr.mxu0 0.0
    %83 = vmatpush1.msra.mxu0 %v54
    %84 = vmatprep.subr.mxu0 0.0
    %85 = vmatpush1.msra.mxu0 %v53
    %86 = vmatprep.subr.mxu0 0.0
    %87 = vmatpush1.msra.mxu0 %v52
    %88 = vmatprep.subr.mxu0 0.0
    %89 = vmatpush1.msra.mxu0 %v51
    %90 = vmatprep.subr.mxu0 0.0
    %91 = vmatpush1.msra.mxu0 %v50
    %92 = vmatprep.subr.mxu0 0.0
    %93 = vmatpush1.msra.mxu0 %v49
    %94 = vmatprep.subr.mxu0 0.0
    %95 = vmatpush1.msra.mxu0 %v48
    %96 = vmatprep.subr.mxu0 0.0
    %97 = vmatpush2.msra.mxu0 0.0
    %98 = vmatprep.subr.mxu0 0.0
    %99 = vmatpush2.msra.mxu0 0.0
    %100 = vmatprep.subr.mxu0 0.0
    %101 = vmatpush2.msra.mxu0 0.0
    %102 = vmatprep.subr.mxu0 0.0
    %103 = vmatpush2.msra.mxu0 0.0
    %104 = vmatprep.subr.mxu0 0.0
    %105 = vmatpush2.msra.mxu0 0.0
    %106 = vmatprep.subr.mxu0 0.0
    %107 = vmatpush2.msra.mxu0 0.0
    %108 = vmatprep.subr.mxu0 0.0
    %109 = vmatpush2.msra.mxu0 0.0
    %110 = vmatprep.subr.mxu0 0.0
    %111 = vmatpush2.msra.mxu0 0.0
    %112 = vmatprep.subr.mxu0 0.0
    %113 = vmatpush2.msra.mxu0 0.0
    %114 = vmatprep.subr.mxu0 0.0
    %115 = vmatpush2.msra.mxu0 0.0
    %116 = vmatprep.subr.mxu0 0.0
    %117 = vmatpush2.msra.mxu0 0.0
    %118 = vmatprep.subr.mxu0 0.0
    %119 = vmatpush2.msra.mxu0 0.0
    %120 = vmatprep.subr.mxu0 0.0
    %121 = vmatpush2.msra.mxu0 0.0
    %122 = vmatprep.subr.mxu0 0.0
    %123 = vmatpush2.msra.mxu0 0.0
    %124 = vmatprep.subr.mxu0 0.0
    %125 = vmatpush2.msra.mxu0 0.0
    %126 = vmatprep.subr.mxu0 0.0
    %127 = vmatpush2.msra.mxu0 0.0
    %128 = vmatprep.mubr.f32.mxu0 0.0
    %129 = vmatmul.mubr.f32.gmra.mxu0 %v47
    %v130 = vpop.f32.mrf.mxu0
    %v131 = vadd.f32 0.0, %v130
    %v132 = vpop.f32.mrf.mxu0
    %133 = vdwg.mxu0
    %v134 = vadd.f32 %v46, %v131
    %135 = vst [vmem:[#allocation2] sm:$0xff] %v134
    // Predicated region
    $region26: #{tpu_custom_call.1} parent=1 // pred_check
      %p136 = pneg %p41
    $region27: #{tpu_custom_call.1} parent=1 // pred_check_branch
      %138 = sbr.rel (%p136) target = $region29
    $region28: #{tpu_custom_call.1} parent=1 // pred_region
      %v139 = vld [vmem:[#allocation2] sm:$0xff]
      %v140 = vld [vmem:[%s2] sm:$0x1]
      %v142 = vlaneseq
      %v143 = vshrl.u32 %v142, 7
      %v144 = vsub.s32 0, %v143
      %v145 = vrot.slane %v140, %v144
      %v147 = vadd.f32 %v139, %v145
      %148 = vst [vmem:[#allocation8] sm:$0xff] %v147
    $region29: #{tpu_custom_call.1} parent=1 // pred_fallthru
      _
    // Predicated region
    $region30: #{tpu_custom_call.1} parent=1 // pred_check
      _
    $region31: #{tpu_custom_call.1} parent=1 // pred_check_branch
      %150 = sbr.rel (0) target = $region33
    $region32: #{tpu_custom_call.1} parent=1 // pred_region
      %s152 = ssub.s32 128, 128
      %153 = vsyncadd [#allocation5], %s152
      %s155 = sshll.u32 [#allocation8], 4
      %s156 = int_to_ptr.vmem [resolvable:$true] %s155
      %158 = dma.vmem_to_hbm [thread:$0]  %s156, 128, %s3, [#allocation5]
    $region33: #{tpu_custom_call.1} parent=1 // pred_fallthru
      _
    // Predicated region
    $region34: #{tpu_custom_call.1} parent=1 // pred_check
      _
    $region35: #{tpu_custom_call.1} parent=1 // pred_check_branch
      %160 = sbr.rel (0) target = $region37
    $region36: #{tpu_custom_call.1} parent=1 // pred_region
      %161 = dma.done [#allocation5], 128
    $region37: #{tpu_custom_call.1} parent=1 // pred_fallthru
      _
    %162 = vsyncpa [#allocation4], 1
    %163 = vsyncpa [#allocation7], 1
    %164 = vsyncpa [#allocation5], 1

</llo_original>
